<compile_context>
chip_gen: v6e
topology: v6e:2x2x1
jax: 0.10.0
libtpu: 0.0.40
codegen_flags: <defaults>
</compile_context>

<pallas_src>
import jax
import jax.numpy as jnp
from jax.experimental import pallas as pl
from jax.experimental.pallas import tpu as pltpu


# ---------------------------------------------------------------------------
# Kernel factories (N, Nt, prefix_tokens are static Python ints baked in).
# ---------------------------------------------------------------------------
def _make_nanmean_kernel(n_tokens, token_tile, prefix_tokens):
    def kernel(x_ref, o_ref, sum_ref, cnt_ref):
        n_idx = pl.program_id(2)

        @pl.when(n_idx == 0)
        def _():
            sum_ref[...] = jnp.zeros_like(sum_ref)
            cnt_ref[...] = jnp.zeros_like(cnt_ref)

        x = x_ref[...].astype(jnp.float32)                       # (Bt, Nt, Dt)
        tok = n_idx * token_tile + jax.lax.broadcasted_iota(
            jnp.int32, x.shape, dimension=1)
        # skip prefix tokens + out-of-range (padded) rows inside the kernel
        in_range = jnp.logical_and(tok >= prefix_tokens, tok < n_tokens)
        valid = jnp.logical_and(in_range, jnp.logical_not(jnp.isnan(x)))
        sum_ref[...] += jnp.sum(jnp.where(valid, x, 0.0), axis=1)
        cnt_ref[...] += jnp.sum(valid.astype(jnp.float32), axis=1)

        @pl.when(n_idx == pl.num_programs(2) - 1)
        def _():
            # 0/0 -> NaN for all-NaN (or empty) columns, matching torch.nanmean.
            o_ref[...] = (sum_ref[...] / cnt_ref[...]).astype(o_ref.dtype)

    return kernel


def _make_minmax_kernel(n_tokens, token_tile, is_max):
    neutral = -jnp.inf if is_max else jnp.inf
    reduce_fn = jnp.max if is_max else jnp.min
    combine_fn = jnp.maximum if is_max else jnp.minimum

    def kernel(x_ref, o_ref, acc_ref):
        n_idx = pl.program_id(2)

        @pl.when(n_idx == 0)
        def _():
            acc_ref[...] = jnp.full_like(acc_ref, neutral)

        x = x_ref[...].astype(jnp.float32)                       # (Bt, Nt, Dt)
        tok = n_idx * token_tile + jax.lax.broadcasted_iota(
            jnp.int32, x.shape, dimension=1)
        # mask only the padded rows; in-range NaNs propagate like torch.max/min.
        xm = jnp.where(tok < n_tokens, x, neutral)
        acc_ref[...] = combine_fn(acc_ref[...], reduce_fn(xm, axis=1))

        @pl.when(n_idx == pl.num_programs(2) - 1)
        def _():
            o_ref[...] = acc_ref[...].astype(o_ref.dtype)

    return kernel


# ---------------------------------------------------------------------------
# Tiling + pallas_call wrapper.
# ---------------------------------------------------------------------------
def _choose_tiles(B, N, D, itemsize, token_tile=None):
    # Batch tile: fill the 8 output sublanes when possible (dense vst).
    Bt = B if B < 8 else 8
    n_b = pl.cdiv(B, Bt)

    # Feature split: give v7x's second TensorCore work when the batch axis
    # alone yields a single parallel step; keep D lane-dense (multiple of 128).
    if n_b == 1 and D % 256 == 0:
        Dt, n_d = D // 2, 2
    else:
        Dt, n_d = D, 1

    # Token tile: each (double-buffered) input block stays a few MiB so the
    # 2-deep pipeline fits v5e/v7x scoped-VMEM defaults, yet is large enough
    # to amortize per-grid-step overhead (v6e roofline).
    if token_tile is None:
        budget_bytes = 2 * 1024 * 1024
        rows = budget_bytes // max(1, Bt * Dt * itemsize)
        if N <= max(rows, 8):
            Nt = N
        else:
            Nt = max(8, (min(rows, N) // 8) * 8)
    else:
        Nt = N if token_tile >= N else max(8, (token_tile // 8) * 8)
    n_n = pl.cdiv(N, Nt)
    return (Bt, n_b), (Dt, n_d), (Nt, n_n)


def _pool_reduce(x, pool_type, prefix_tokens=0, token_tile=None):
    """x: [B, N, D] -> [B, D], reducing over the token axis inside Pallas."""
    B, N, D = x.shape
    itemsize = jnp.dtype(x.dtype).itemsize
    (Bt, n_b), (Dt, n_d), (Nt, n_n) = _choose_tiles(B, N, D, itemsize, token_tile)

    if pool_type == "mean":
        kernel = _make_nanmean_kernel(N, Nt, prefix_tokens)
        n_acc = 2                       # running sum + running count
    elif pool_type == "max":
        kernel = _make_minmax_kernel(N, Nt, is_max=True)
        n_acc = 1
    elif pool_type == "min":
        kernel = _make_minmax_kernel(N, Nt, is_max=False)
        n_acc = 1
    else:
        raise ValueError(pool_type)

    return pl.pallas_call(
        kernel,
        out_shape=jax.ShapeDtypeStruct((B, D), x.dtype),
        grid_spec=pltpu.PrefetchScalarGridSpec(
            num_scalar_prefetch=0,
            grid=(n_b, n_d, n_n),                       # reduction axis last
            in_specs=[pl.BlockSpec((Bt, Nt, Dt), lambda b, d, n: (b, n, d))],
            out_specs=pl.BlockSpec((Bt, Dt), lambda b, d, n: (b, d)),
            scratch_shapes=[pltpu.VMEM((Bt, Dt), jnp.float32)] * n_acc,
        ),
        compiler_params=pltpu.CompilerParams(
            dimension_semantics=("parallel", "parallel", "arbitrary")),
    )(x)


# ---------------------------------------------------------------------------
# Module wrapper (no parameters in this module).
# ---------------------------------------------------------------------------
class Pooling:
    def __init__(self, pool_type="mean", prefix_tokens=1):
        self.pool_type = pool_type
        self.prefix_tokens = prefix_tokens

    def __call__(self, x, token_tile=None):
        if self.pool_type == "mean":
            # prefix tokens are skipped inside the kernel (no HBM pre-slice)
            return _pool_reduce(x, "mean", prefix_tokens=self.prefix_tokens,
                                token_tile=token_tile)
        elif self.pool_type == "max":
            return _pool_reduce(x, "max", token_tile=token_tile)
        elif self.pool_type == "min":
            return _pool_reduce(x, "min", token_tile=token_tile)
        elif self.pool_type == "cls":
            # Pure data movement: per perf review, a Pallas kernel would only
            # add DMA volume / step overhead, so keep it as a plain slice.
            return x[:, 0]
        else:
            raise ValueError(f"Invalid pool type: {self.pool_type}")


if __name__ == "__main__":
    key = jax.random.PRNGKey(0)

    def make_input(k, B, N, D):
        k1, k2 = jax.random.split(k)
        v = jax.random.normal(k1, (B, N, D), dtype=jnp.float32)
        nan_mask = jax.random.bernoulli(k2, 0.1, (B, N, D))
        return jnp.where(nan_mask, jnp.nan, v)

    k1, k2 = jax.random.split(key)
    # case 1: tiny shape, whole token axis in one block (grid = (1,1,1))
    x1 = make_input(k1, 2, 9, 32)        # 1 cls token + 8 content tokens
    # case 2: forces the token-tiled accumulator path (Nt=8 -> 3 steps,
    # partial last block exercises in-kernel masking)
    x2 = make_input(k2, 4, 20, 128)

    for x, token_tile in ((x1, None), (x2, 8)):
        out_mean = jax.block_until_ready(
            Pooling("mean", prefix_tokens=1)(x, token_tile=token_tile))
        out_max = jax.block_until_ready(Pooling("max")(x, token_tile=token_tile))
        out_min = jax.block_until_ready(Pooling("min")(x, token_tile=token_tile))
        out_cls = jax.block_until_ready(Pooling("cls")(x))

        ref_mean = jnp.nanmean(x[:, 1:, :], axis=1)
        ref_max = jnp.max(x, axis=1)
        ref_min = jnp.min(x, axis=1)
        ref_cls = x[:, 0]

        assert out_mean.shape == (x.shape[0], x.shape[2])
        assert jnp.allclose(out_mean, ref_mean, atol=1e-5, rtol=1e-5,
                            equal_nan=True)
        assert jnp.allclose(out_max, ref_max, equal_nan=True)
        assert jnp.allclose(out_min, ref_min, equal_nan=True)
        assert jnp.allclose(out_cls, ref_cls, equal_nan=True)

    print("KERNEL_OK")
</pallas_src>

<mosaic_0001>
module attributes {stable_mosaic.version = 11 : i64} {
  func.func @kernel(%arg0: i32, %arg1: i32, %arg2: i32, %arg3: memref<2x9x32xf32, #tpu.memory_space<vmem>>, %arg4: memref<2x32xf32, #tpu.memory_space<vmem>>, %arg5: memref<2x32xf32, #tpu.memory_space<vmem>>, %arg6: memref<2x32xf32, #tpu.memory_space<vmem>>) attributes {dimension_semantics = [#tpu.dimension_semantics<parallel>, #tpu.dimension_semantics<parallel>, #tpu.dimension_semantics<arbitrary>], iteration_bounds = array<i64: 1, 1, 1>, scalar_prefetch = 0 : i64, scratch_operands = 2 : i64, tpu.core_type = #tpu.core_type<tc>, window_params = [{transform_indices = @transform_0, window_bounds = array<i64: 2, 9, 32>}, {transform_indices = @transform_1, window_bounds = array<i64: 2, 32>}]} {
    %c0_i32 = arith.constant 0 : i32
    %0 = arith.cmpi eq, %arg2, %c0_i32 : i32
    %1 = arith.extui %0 : i1 to i32
    %c0_i32_0 = arith.constant 0 : i32
    %2 = arith.cmpi ne, %1, %c0_i32_0 : i32
    scf.if %2 {
      %cst_17 = arith.constant 0.000000e+00 : f32
      %31 = vector.broadcast %cst_17 : f32 to vector<2x32xf32>
      %c0_18 = arith.constant 0 : index
      %c0_19 = arith.constant 0 : index
      %32 = vector.load %arg5[%c0_18, %c0_19] : memref<2x32xf32, #tpu.memory_space<vmem>>, vector<2x32xf32>
      tpu.vector_store %arg5[%c0_18, %c0_19], %31 {strides = array<i32>} : memref<2x32xf32, #tpu.memory_space<vmem>>, vector<2x32xf32>,
      %cst_20 = arith.constant 0.000000e+00 : f32
      %33 = vector.broadcast %cst_20 : f32 to vector<2x32xf32>
      %c0_21 = arith.constant 0 : index
      %c0_22 = arith.constant 0 : index
      %34 = vector.load %arg6[%c0_21, %c0_22] : memref<2x32xf32, #tpu.memory_space<vmem>>, vector<2x32xf32>
      tpu.vector_store %arg6[%c0_21, %c0_22], %33 {strides = array<i32>} : memref<2x32xf32, #tpu.memory_space<vmem>>, vector<2x32xf32>,
    } else {
    }
    %c0 = arith.constant 0 : index
    %c0_1 = arith.constant 0 : index
    %c0_2 = arith.constant 0 : index
    %3 = vector.load %arg3[%c0, %c0_1, %c0_2] : memref<2x9x32xf32, #tpu.memory_space<vmem>>, vector<2x9x32xf32>
    %c9_i32 = arith.constant 9 : i32
    %4 = arith.muli %arg2, %c9_i32 : i32
    %5 = tpu.iota {dimensions = array<i32: 1>} : vector<2x9x32xi32>
    %6 = vector.broadcast %4 : i32 to vector<2x9x32xi32>
    %7 = arith.addi %6, %5 : vector<2x9x32xi32>
    %c1_i32 = arith.constant 1 : i32
    %8 = vector.broadcast %c1_i32 : i32 to vector<2x9x32xi32>
    %9 = arith.cmpi sge, %7, %8 : vector<2x9x32xi32>
    %c9_i32_3 = arith.constant 9 : i32
    %10 = vector.broadcast %c9_i32_3 : i32 to vector<2x9x32xi32>
    %11 = arith.cmpi slt, %7, %10 : vector<2x9x32xi32>
    %12 = arith.andi %9, %11 : vector<2x9x32xi1>
    %13 = arith.cmpf one, %3, %3 : vector<2x9x32xf32>
    %cst = arith.constant dense<true> : vector<2x9x32xi1>
    %14 = arith.xori %13, %cst : vector<2x9x32xi1>
    %15 = arith.andi %12, %14 : vector<2x9x32xi1>
    %c0_4 = arith.constant 0 : index
    %c0_5 = arith.constant 0 : index
    %16 = vector.load %arg5[%c0_4, %c0_5] : memref<2x32xf32, #tpu.memory_space<vmem>>, vector<2x32xf32>
    %cst_6 = arith.constant 0.000000e+00 : f32
    %17 = vector.broadcast %cst_6 : f32 to vector<2x9x32xf32>
    %18 = arith.select %15, %3, %17 : vector<2x9x32xi1>, vector<2x9x32xf32>
    %cst_7 = arith.constant dense<0.000000e+00> : vector<2x32xf32>
    %19 = vector.multi_reduction <add>, %18, %cst_7 [1] : vector<2x9x32xf32> to vector<2x32xf32>
    %20 = arith.addf %16, %19 : vector<2x32xf32>
    %c0_8 = arith.constant 0 : index
    %c0_9 = arith.constant 0 : index
    %21 = vector.load %arg5[%c0_8, %c0_9] : memref<2x32xf32, #tpu.memory_space<vmem>>, vector<2x32xf32>
    tpu.vector_store %arg5[%c0_8, %c0_9], %20 {strides = array<i32>} : memref<2x32xf32, #tpu.memory_space<vmem>>, vector<2x32xf32>,
    %c0_10 = arith.constant 0 : index
    %c0_11 = arith.constant 0 : index
    %22 = vector.load %arg6[%c0_10, %c0_11] : memref<2x32xf32, #tpu.memory_space<vmem>>, vector<2x32xf32>
    %23 = arith.extui %15 : vector<2x9x32xi1> to vector<2x9x32xi32>
    %24 = arith.sitofp %23 : vector<2x9x32xi32> to vector<2x9x32xf32>
    %cst_12 = arith.constant dense<0.000000e+00> : vector<2x32xf32>
    %25 = vector.multi_reduction <add>, %24, %cst_12 [1] : vector<2x9x32xf32> to vector<2x32xf32>
    %26 = arith.addf %22, %25 : vector<2x32xf32>
    %c0_13 = arith.constant 0 : index
    %c0_14 = arith.constant 0 : index
    %27 = vector.load %arg6[%c0_13, %c0_14] : memref<2x32xf32, #tpu.memory_space<vmem>>, vector<2x32xf32>
    tpu.vector_store %arg6[%c0_13, %c0_14], %26 {strides = array<i32>} : memref<2x32xf32, #tpu.memory_space<vmem>>, vector<2x32xf32>,
    %c0_i32_15 = arith.constant 0 : i32
    %28 = arith.cmpi eq, %arg2, %c0_i32_15 : i32
    %29 = arith.extui %28 : i1 to i32
    %c0_i32_16 = arith.constant 0 : i32
    %30 = arith.cmpi ne, %29, %c0_i32_16 : i32
    scf.if %30 {
      %c0_17 = arith.constant 0 : index
      %c0_18 = arith.constant 0 : index
      %31 = vector.load %arg5[%c0_17, %c0_18] : memref<2x32xf32, #tpu.memory_space<vmem>>, vector<2x32xf32>
      %c0_19 = arith.constant 0 : index
      %c0_20 = arith.constant 0 : index
      %32 = vector.load %arg6[%c0_19, %c0_20] : memref<2x32xf32, #tpu.memory_space<vmem>>, vector<2x32xf32>
      %33 = arith.divf %31, %32 : vector<2x32xf32>
      %c0_21 = arith.constant 0 : index
      %c0_22 = arith.constant 0 : index
      %34 = vector.load %arg4[%c0_21, %c0_22] : memref<2x32xf32, #tpu.memory_space<vmem>>, vector<2x32xf32>
      tpu.vector_store %arg4[%c0_21, %c0_22], %33 {strides = array<i32>} : memref<2x32xf32, #tpu.memory_space<vmem>>, vector<2x32xf32>,
    } else {
    }
    return
  }
  func.func @transform_0(%arg0: i32, %arg1: i32, %arg2: i32) -> (i32, i32, i32) {
    %c0_i32 = arith.constant 0 : i32
    return %arg0, %arg2, %arg1 : i32, i32, i32
  }
  func.func @transform_1(%arg0: i32, %arg1: i32, %arg2: i32) -> (i32, i32) {
    %c0_i32 = arith.constant 0 : i32
    return %arg0, %arg1 : i32, i32
  }
}

</mosaic_0001>

<llo_original>
// kernel: tpu_custom_call.1
$region0: #{tpu_custom_call.1}
  #allocation0 [shape = 'u32[]', space=smem, size = 0x4, offset = 0x4, fixed_abs, tag = 'smem constant byte address 0x4 - core index']
  #allocation1 [shape = 'u32[144,128]{1,0:T(1,128)}', space=vmem, size = 0x12000, scoped, tag = 'internal scratch']
  #allocation2 [shape = 'f32[2,32]{1,0:T(2,128)}', space=vmem, size = 0x400, scoped, tag = 'scratch operand']
  #allocation3 [shape = 'f32[2,32]{1,0:T(2,128)}', space=vmem, size = 0x400, scoped, tag = 'scratch operand']
  %s0 = inlined_call_operand.vmem [shape: f32[2,9,32], index: 0, kind: input, shape index: {}]
  %s1 = inlined_call_operand.hbm [shape: f32[2,32], index: 1, kind: output, shape index: {}]
  %s2 = sld [smem:[#allocation0]]
  $region22: #{tpu_custom_call.1} parent=0
    _
  %s4 = ssub.s32 1, %s2
  %s5 = scalar_select 0, %s4, %s2
  $region1: #{tpu_custom_call.1} parent=0
    #allocation4 [shape = 'u8[1024]{0}', space=vmem, size = 0x400, scoped, tag = 'output window, operand 0, single buffered']
    #allocation5 [shape = 's32[1]{0}', space=sflag, size = 0x4, scoped, tag = 'scoped memory for tpu_custom_call.1']
    %6 = vsyncpa [#allocation5], 0
    // Predicated region
    $region2: #{tpu_custom_call.1} parent=1 // pred_check
      _
    $region3: #{tpu_custom_call.1} parent=1 // pred_check_branch
      %8 = sbr.rel (0) target = $region5
    $region4: #{tpu_custom_call.1} parent=1 // pred_region
      _
    $region5: #{tpu_custom_call.1} parent=1 // pred_fallthru
      _
    %p9 = scmp.eq.s32.totalorder 0, 0
    // Predicated region
    $region6: #{tpu_custom_call.1} parent=1 // pred_check
      %p10 = pneg %p9
    $region7: #{tpu_custom_call.1} parent=1 // pred_check_branch
      %12 = sbr.rel (%p10) target = $region9
    $region8: #{tpu_custom_call.1} parent=1 // pred_region
      %vm13 = vcmask 254976
      %14 = vst.msk [vmem:[#allocation2] sm:$0x3] %vm13, 0.0
      %15 = vst.msk [vmem:[#allocation3] sm:$0x3] %vm13, 0.0
    $region9: #{tpu_custom_call.1} parent=1 // pred_fallthru
      _
    %v16 = vld [vmem:[%s0] sm:$0xff]
    %v17 = vld [vmem:[%s0 + $0x8] sm:$0x1]
    %v18 = vld [vmem:[%s0 + $0x10] sm:$0xff]
    %v19 = vld [vmem:[%s0 + $0x18] sm:$0x1]
    %s20 = smul.u32 0, 9
    %v21 = vlaneseq
    %v22 = vshrl.u32 %v21, 7
    %v23 = vadd.s32 %v22, 8
    %v24 = vstv %s20
    %v25 = vadd.s32 %v24, %v22
    %v26 = vadd.s32 %v24, %v23
    %vm27 = vcmp.ge.s32.totalorder %v25, 1
    %vm28 = vcmp.ge.s32.totalorder %v26, 1
    %vm29 = vcmp.lt.s32.totalorder %v25, 9
    %vm30 = vcmp.lt.s32.totalorder %v26, 9
    %vm31 = vmand %vm27, %vm29
    %vm32 = vmand %vm28, %vm30
    %vm33 = vcmp.ne.f32.partialorder %v16, %v16
    %vm34 = vcmp.ne.f32.partialorder %v17, %v17
    %vm35 = vcmp.ne.f32.partialorder %v18, %v18
    %vm36 = vcmp.ne.f32.partialorder %v19, %v19
    %vm37 = vmxor %vm33, 1
    %vm38 = vmxor %vm34, 1
    %vm39 = vmxor %vm35, 1
    %vm40 = vmxor %vm36, 1
    %vm41 = vmand %vm31, %vm37
    %vm42 = vmand %vm32, %vm38
    %vm43 = vmand %vm31, %vm39
    %vm44 = vmand %vm32, %vm40
    %v45 = vld [vmem:[#allocation2] sm:$0x3]
    %v46 = vsel %vm41, %v16, 0.0
    %v47 = vsel %vm42, %v17, 0.0
    %v48 = vsel %vm43, %v18, 0.0
    %v49 = vsel %vm44, %v19, 0.0
    %vm50 = vcmask 261120
    %v51 = vsel %vm50, %v46, 0.0
    %vm52 = vcmask 253952
    %v53 = vsel %vm52, %v47, 0.0
    %v54 = vadd.f32 %v51, %v53
    %v55 = vrot.slane %v54, 4
    %v56 = vadd.f32 %v54, %v55
    %v57 = vrot.slane %v56, 2
    %v58 = vadd.f32 %v56, %v57
    %v59 = vrot.slane %v58, 1
    %v60 = vadd.f32 %v58, %v59
    %v61 = vsel %vm50, %v48, 0.0
    %v62 = vsel %vm52, %v49, 0.0
    %v63 = vadd.f32 %v61, %v62
    %v64 = vrot.slane %v63, 4
    %v65 = vadd.f32 %v63, %v64
    %v66 = vrot.slane %v65, 2
    %v67 = vadd.f32 %v65, %v66
    %v68 = vrot.slane %v67, 1
    %v69 = vadd.f32 %v67, %v68
    %vm72 = vcmask 1041409
    %v73 = vsel %vm72, %v69, %v60
    %v75 = vadd.f32 %v45, %v73
    %vm76 = vcmask 254976
    %77 = vst.msk [vmem:[#allocation2] sm:$0x3] %vm76, %v75
    %v78 = vld [vmem:[#allocation3] sm:$0x3]
    %v79 = vsel %vm41, 1, 0
    %v80 = vsel %vm42, 1, 0
    %v81 = vsel %vm43, 1, 0
    %v82 = vsel %vm44, 1, 0
    %v83 = vcvt.s32.f32 %v79
    %v84 = vcvt.s32.f32 %v80
    %v85 = vcvt.s32.f32 %v81
    %v86 = vcvt.s32.f32 %v82
    %v87 = vsel %vm50, %v83, 0.0
    %v88 = vsel %vm52, %v84, 0.0
    %v89 = vadd.f32 %v87, %v88
    %v90 = vrot.slane %v89, 4
    %v91 = vadd.f32 %v89, %v90
    %v92 = vrot.slane %v91, 2
    %v93 = vadd.f32 %v91, %v92
    %v94 = vrot.slane %v93, 1
    %v95 = vadd.f32 %v93, %v94
    %v96 = vsel %vm50, %v85, 0.0
    %v97 = vsel %vm52, %v86, 0.0
    %v98 = vadd.f32 %v96, %v97
    %v99 = vrot.slane %v98, 4
    %v100 = vadd.f32 %v98, %v99
    %v101 = vrot.slane %v100, 2
    %v102 = vadd.f32 %v100, %v101
    %v103 = vrot.slane %v102, 1
    %v104 = vadd.f32 %v102, %v103
    %v107 = vsel %vm72, %v104, %v95
    %v109 = vadd.f32 %v78, %v107
    %110 = vst.msk [vmem:[#allocation3] sm:$0x3] %vm76, %v109
    // Predicated region
    $region10: #{tpu_custom_call.1} parent=1 // pred_check
      %p111 = pneg %p9
    $region11: #{tpu_custom_call.1} parent=1 // pred_check_branch
      %113 = sbr.rel (%p111) target = $region13
    $region12: #{tpu_custom_call.1} parent=1 // pred_region
      %v114 = vld [vmem:[#allocation2] sm:$0x3]
      %v115 = vld [vmem:[#allocation3] sm:$0x3]
      %v116 = vrcp.pop %v115
      %v117 = vmul.f32 %v114, %v116
      %118 = vst.msk [vmem:[#allocation4] sm:$0x3] %vm76, %v117
    $region13: #{tpu_custom_call.1} parent=1 // pred_fallthru
      _
    // Predicated region
    $region14: #{tpu_custom_call.1} parent=1 // pred_check
      _
    $region15: #{tpu_custom_call.1} parent=1 // pred_check_branch
      %120 = sbr.rel (0) target = $region17
    $region16: #{tpu_custom_call.1} parent=1 // pred_region
      %s122 = ssub.s32 32, 32
      %123 = vsyncadd [#allocation5], %s122
      %s125 = sshll.u32 [#allocation4], 4
      %s126 = int_to_ptr.vmem [resolvable:$true] %s125
      %128 = dma.vmem_to_hbm [thread:$0]  %s126, 32, %s1, [#allocation5]
    $region17: #{tpu_custom_call.1} parent=1 // pred_fallthru
      _
    // Predicated region
    $region18: #{tpu_custom_call.1} parent=1 // pred_check
      _
    $region19: #{tpu_custom_call.1} parent=1 // pred_check_branch
      %130 = sbr.rel (0) target = $region21
    $region20: #{tpu_custom_call.1} parent=1 // pred_region
      %131 = dma.done [#allocation5], 32
    $region21: #{tpu_custom_call.1} parent=1 // pred_fallthru
      _
    %132 = vsyncpa [#allocation5], 1

</llo_original>
